<compile_context>
chip_gen: v7x
topology: tpu7x:2x2x1
jax: 0.10.0
libtpu: 0.0.40
codegen_flags: <defaults>
</compile_context>

<pallas_src>
import functools

import jax
import jax.numpy as jnp
from jax.experimental import pallas as pl
from jax.experimental.pallas import tpu as pltpu


def _mfvi_kernel(unary_ref, mask_ref, tall_ref, bias_ref, out_ref,
                 *, iterations: int, window_size: int, seq_len: int):
    B, S, L = unary_ref.shape
    M = B * S

    m3 = mask_ref[...]                            # (B, S, 1)
    u3 = unary_ref[...] * m3                      # unary_score * mask
    base3 = u3 + bias_ref[...][None, :, :]        # fold start/end bias in once

    u = u3.reshape(M, L)
    base = base3.reshape(M, L)
    m = m3.reshape(M, 1)
    tall = tall_ref[...]                          # (L, 2*W*L) = [T1|T1^T|T2|...]

    # Iteration-invariant: within-sequence position of every flattened row and
    # the keep-masks for each window offset (hoisted out of the MFVI loop).
    pos = jax.lax.broadcasted_iota(jnp.int32, (B, S, L), 1).reshape(M, L)
    keep_down = [pos >= j for j in range(1, window_size + 1)]
    keep_up = [pos < (seq_len - j) for j in range(1, window_size + 1)]

    q = u
    for _ in range(iterations):
        # stable softmax over labels; reciprocal runs on the EUP slot
        mx = jnp.max(q, axis=-1, keepdims=True)
        e = jnp.exp(q - mx)
        p = e * pl.reciprocal(jnp.sum(e, axis=-1, keepdims=True))

        # single MXU push per iteration: p @ [T_1 | T_1^T | T_2 | T_2^T | ...]
        pt = jnp.dot(p, tall, preferred_element_type=jnp.float32)   # (M, 2*W*L)

        s = base
        for j in range(1, window_size + 1):
            qT = pt[:, (2 * j - 2) * L:(2 * j - 1) * L]   # p @ T_j
            qTt = pt[:, (2 * j - 1) * L:(2 * j) * L]      # p @ T_j^T
            down = pltpu.roll(qT, j, 0)        # row s <- row s-j (XLU, cheap)
            up = pltpu.roll(qTt, M - j, 0)     # row s <- row s+j
            s = s + jnp.where(keep_down[j - 1], down, 0.0)
            s = s + jnp.where(keep_up[j - 1], up, 0.0)

        q = s * m

    out_ref[...] = q.reshape(B, S, L)


def _choose_batch_block(N, S, L, W, target_rows=256, vmem_budget=8 << 20):
    """Largest divisor of N whose flattened M=B*S feeds the MXU without blowing VMEM."""
    if S % 8 != 0:           # keep the (B,S,L)->(B*S,L) reshape layout-free
        return 1
    best = 1
    for b in range(1, N + 1):
        if N % b != 0:
            continue
        rows = b * S
        # rough live f32 footprint: block in/out (double buffered) + temps
        approx_bytes = 4 * rows * (8 * L + 2 * W * L)
        if rows <= max(target_rows, S) and approx_bytes <= vmem_budget:
            best = b
    return best


def mfvi_forward(unary, mask, transitions, transitions_start, transitions_end,
                 iterations=3):
    """Pallas implementation of MFVI.forward (add_start_end=True path)."""
    N, S, L = unary.shape
    out_dtype = unary.dtype
    mask_f = mask.astype(jnp.float32)

    # PyTorch forward early-return when max_sent_len == 1
    if S == 1:
        return (unary.astype(jnp.float32) * mask_f[..., None]).astype(out_dtype)

    # forward() truncates binary scores to min(window_size, S-1)
    W = min(transitions.shape[0], S - 1)
    trans = transitions.astype(jnp.float32)[:W]
    start = transitions_start.astype(jnp.float32)[:W]
    end = transitions_end.astype(jnp.float32)[:W]

    # [T_1 | T_1^T | T_2 | T_2^T | ...] -> single wide MXU operand (L, 2*W*L)
    parts = []
    for j in range(W):
        parts.append(trans[j])
        parts.append(trans[j].T)
    tall = jnp.concatenate(parts, axis=1)

    # iteration-invariant start/end bias per sequence position, computed once
    pos = jnp.arange(S)[:, None]
    bias = jnp.zeros((S, L), jnp.float32)
    for j in range(1, W + 1):
        bias = bias + jnp.where(pos < j, start[j - 1][None, :], 0.0)
        bias = bias + jnp.where(pos >= j, end[j - 1][None, :], 0.0)

    unary_f = unary.astype(jnp.float32)
    mask3 = mask_f[:, :, None]                     # (N, S, 1)

    B_blk = _choose_batch_block(N, S, L, W)
    grid = (N // B_blk,)

    kernel = functools.partial(_mfvi_kernel, iterations=iterations,
                               window_size=W, seq_len=S)

    flops = int(2 * iterations * N * S * L * (2 * W * L))
    transcendentals = int(iterations * N * S * L)
    bytes_accessed = int(4 * (2 * N * S * L + N * S + L * 2 * W * L + S * L))

    # TODO(synk): for very small L (=32 lanes) the output store is lane-masked;
    # padding L to 128 or flattening to (B, S*L) would make it lane-dense but
    # needs an in-kernel minor-dim relayout, so it is left as-is.
    out = pl.pallas_call(
        kernel,
        out_shape=jax.ShapeDtypeStruct((N, S, L), jnp.float32),
        grid=grid,
        in_specs=[
            pl.BlockSpec((B_blk, S, L), lambda n: (n, 0, 0)),
            pl.BlockSpec((B_blk, S, 1), lambda n: (n, 0, 0)),
            pl.BlockSpec((L, 2 * W * L), lambda n: (0, 0)),
            pl.BlockSpec((S, L), lambda n: (0, 0)),
        ],
        out_specs=pl.BlockSpec((B_blk, S, L), lambda n: (n, 0, 0)),
        compiler_params=pltpu.CompilerParams(
            dimension_semantics=("parallel",)),
        cost_estimate=pl.CostEstimate(
            flops=flops, transcendentals=transcendentals,
            bytes_accessed=bytes_accessed),
    )(unary_f, mask3, tall, bias)

    return out.astype(out_dtype)


def mfvi_reference(unary, mask, transitions, transitions_start,
                   transitions_end, iterations=3):
    """Pure-JAX reference mirroring the PyTorch code exactly."""
    W = transitions.shape[0]
    m3 = mask.astype(unary.dtype)[..., None]
    u = unary * m3
    if unary.shape[1] == 1:
        return u
    q = u
    for _ in range(iterations):
        p = jax.nn.softmax(q, axis=-1)
        s_minus = jnp.zeros_like(p)
        s_plus = jnp.zeros_like(p)
        for j in range(1, W + 1):
            T = transitions[j - 1]
            s_minus = s_minus.at[:, j:].add(
                jnp.einsum('nsa,ab->nsb', p[:, :-j], T))
            s_minus = s_minus.at[:, :j].add(transitions_start[j - 1])
            s_plus = s_plus.at[:, :-j].add(
                jnp.einsum('nsb,ab->nsa', p[:, j:], T))
            s_plus = s_plus.at[:, j:].add(transitions_end[j - 1])
        q = u + s_minus + s_plus
        q = q * m3
    return q


if __name__ == "__main__":
    # Module config (add_start_end=True is required by the PyTorch MFVI loop,
    # which always references transitions_start / transitions_end).
    label_size = 32
    window_size = 1
    iterations = 3

    # Problem sizes
    N, S, L = 2, 8, label_size

    key = jax.random.PRNGKey(0)
    k_u, k_t, k_s, k_e = jax.random.split(key, 4)

    unary = jax.random.normal(k_u, (N, S, L), dtype=jnp.float32)
    # mask: first sentence full length 8, second sentence length 5
    lengths = jnp.array([8, 5], dtype=jnp.int32)
    mask = (jnp.arange(S)[None, :] < lengths[:, None]).astype(jnp.float32)

    # deterministic "randn" parameter init (shapes from __init__)
    transitions = jax.random.normal(k_t, (window_size, L, L), dtype=jnp.float32)
    transitions_start = jax.random.normal(k_s, (window_size, L), dtype=jnp.float32)
    transitions_end = jax.random.normal(k_e, (window_size, L), dtype=jnp.float32)

    out = mfvi_forward(unary, mask, transitions, transitions_start,
                       transitions_end, iterations=iterations)
    out = jax.block_until_ready(out)

    ref = mfvi_reference(unary, mask, transitions, transitions_start,
                         transitions_end, iterations=iterations)
    assert out.shape == (N, S, L)
    assert jnp.allclose(out, ref, atol=2e-4, rtol=2e-4), (
        float(jnp.max(jnp.abs(out - ref))))

    print("KERNEL_OK")
</pallas_src>

<mosaic_0001>
module attributes {stable_mosaic.version = 11 : i64} {
  func.func @_mfvi_kernel(%arg0: i32, %arg1: memref<2x8x32xf32, #tpu.memory_space<vmem>>, %arg2: memref<2x8x1xf32, #tpu.memory_space<vmem>>, %arg3: memref<32x64xf32, #tpu.memory_space<vmem>>, %arg4: memref<8x32xf32, #tpu.memory_space<vmem>>, %arg5: memref<2x8x32xf32, #tpu.memory_space<vmem>>) attributes {dimension_semantics = [#tpu.dimension_semantics<parallel>], iteration_bounds = array<i64: 1>, scalar_prefetch = 0 : i64, scratch_operands = 0 : i64, tpu.core_type = #tpu.core_type<tc>, window_params = [{transform_indices = @transform_0, window_bounds = array<i64: 2, 8, 32>}, {transform_indices = @transform_1, window_bounds = array<i64: 2, 8, 1>}, {pipeline_mode = #tpu.pipeline_mode<synchronous>, transform_indices = @transform_2, window_bounds = array<i64: 32, 64>}, {pipeline_mode = #tpu.pipeline_mode<synchronous>, transform_indices = @transform_3, window_bounds = array<i64: 8, 32>}, {transform_indices = @transform_4, window_bounds = array<i64: 2, 8, 32>}]} {
    %c0 = arith.constant 0 : index
    %c0_0 = arith.constant 0 : index
    %c0_1 = arith.constant 0 : index
    %0 = vector.load %arg2[%c0, %c0_0, %c0_1] : memref<2x8x1xf32, #tpu.memory_space<vmem>>, vector<2x8x1xf32>
    %c0_2 = arith.constant 0 : index
    %c0_3 = arith.constant 0 : index
    %c0_4 = arith.constant 0 : index
    %1 = vector.load %arg1[%c0_2, %c0_3, %c0_4] : memref<2x8x32xf32, #tpu.memory_space<vmem>>, vector<2x8x32xf32>
    %2 = vector.broadcast %0 : vector<2x8x1xf32> to vector<2x8x32xf32>
    %3 = arith.mulf %1, %2 : vector<2x8x32xf32>
    %c0_5 = arith.constant 0 : index
    %c0_6 = arith.constant 0 : index
    %4 = vector.load %arg4[%c0_5, %c0_6] : memref<8x32xf32, #tpu.memory_space<vmem>>, vector<8x32xf32>
    %5 = vector.shape_cast %4 : vector<8x32xf32> to vector<1x8x32xf32>
    %6 = vector.broadcast %5 : vector<1x8x32xf32> to vector<2x8x32xf32>
    %7 = arith.addf %3, %6 : vector<2x8x32xf32>
    %8 = vector.shape_cast %3 : vector<2x8x32xf32> to vector<16x32xf32>
    %9 = vector.shape_cast %7 : vector<2x8x32xf32> to vector<16x32xf32>
    %10 = vector.shape_cast %0 : vector<2x8x1xf32> to vector<16x1xf32>
    %c0_7 = arith.constant 0 : index
    %c0_8 = arith.constant 0 : index
    %11 = vector.load %arg3[%c0_7, %c0_8] : memref<32x64xf32, #tpu.memory_space<vmem>>, vector<32x64xf32>
    %12 = tpu.iota {dimensions = array<i32: 1>} : vector<2x8x32xi32>
    %13 = vector.shape_cast %12 : vector<2x8x32xi32> to vector<16x32xi32>
    %c1_i32 = arith.constant 1 : i32
    %14 = vector.broadcast %c1_i32 : i32 to vector<16x32xi32>
    %15 = arith.cmpi sge, %13, %14 : vector<16x32xi32>
    %c7_i32 = arith.constant 7 : i32
    %16 = vector.broadcast %c7_i32 : i32 to vector<16x32xi32>
    %17 = arith.cmpi slt, %13, %16 : vector<16x32xi32>
    %cst = arith.constant dense<0xFF800000> : vector<16xf32>
    %18 = vector.multi_reduction <maximumf>, %8, %cst [1] : vector<16x32xf32> to vector<16xf32>
    %19 = vector.shape_cast %18 : vector<16xf32> to vector<16x1xf32>
    %20 = vector.broadcast %19 : vector<16x1xf32> to vector<16x32xf32>
    %21 = arith.subf %8, %20 : vector<16x32xf32>
    %22 = math.exp %21 : vector<16x32xf32>
    %cst_9 = arith.constant dense<0.000000e+00> : vector<16xf32>
    %23 = vector.multi_reduction <add>, %22, %cst_9 [1] : vector<16x32xf32> to vector<16xf32>
    %24 = vector.shape_cast %23 : vector<16xf32> to vector<16x1xf32>
    %25 = tpu.reciprocal %24 : vector<16x1xf32> -> vector<16x1xf32>
    %26 = vector.broadcast %25 : vector<16x1xf32> to vector<16x32xf32>
    %27 = arith.mulf %22, %26 : vector<16x32xf32>
    %cst_10 = arith.constant dense<0.000000e+00> : vector<16x64xf32>
    %28 = tpu.matmul %27, %11, %cst_10 {dimension_numbers = #tpu.dot_dimension_numbers<[1], [0], [0], [1], [0, 0, 1, 1], [], []>} : vector<16x32xf32>, vector<32x64xf32>, vector<16x64xf32> -> vector<16x64xf32>
    %29 = vector.extract_strided_slice %28 {offsets = [0, 0], sizes = [16, 32], strides = [1, 1]} : vector<16x64xf32> to vector<16x32xf32>
    %30 = vector.extract_strided_slice %28 {offsets = [0, 32], sizes = [16, 32], strides = [1, 1]} : vector<16x64xf32> to vector<16x32xf32>
    %c1_i32_11 = arith.constant 1 : i32
    %31 = tpu.dynamic_rotate %29 by %c1_i32_11 dim 0 : vector<16x32xf32>, i32 -> vector<16x32xf32>
    %c15_i32 = arith.constant 15 : i32
    %32 = tpu.dynamic_rotate %30 by %c15_i32 dim 0 : vector<16x32xf32>, i32 -> vector<16x32xf32>
    %cst_12 = arith.constant 0.000000e+00 : f32
    %33 = vector.broadcast %cst_12 : f32 to vector<16x32xf32>
    %34 = arith.select %15, %31, %33 : vector<16x32xi1>, vector<16x32xf32>
    %35 = arith.addf %9, %34 : vector<16x32xf32>
    %cst_13 = arith.constant 0.000000e+00 : f32
    %36 = vector.broadcast %cst_13 : f32 to vector<16x32xf32>
    %37 = arith.select %17, %32, %36 : vector<16x32xi1>, vector<16x32xf32>
    %38 = arith.addf %35, %37 : vector<16x32xf32>
    %39 = vector.broadcast %10 : vector<16x1xf32> to vector<16x32xf32>
    %40 = arith.mulf %38, %39 : vector<16x32xf32>
    %cst_14 = arith.constant dense<0xFF800000> : vector<16xf32>
    %41 = vector.multi_reduction <maximumf>, %40, %cst_14 [1] : vector<16x32xf32> to vector<16xf32>
    %42 = vector.shape_cast %41 : vector<16xf32> to vector<16x1xf32>
    %43 = vector.broadcast %42 : vector<16x1xf32> to vector<16x32xf32>
    %44 = arith.subf %40, %43 : vector<16x32xf32>
    %45 = math.exp %44 : vector<16x32xf32>
    %cst_15 = arith.constant dense<0.000000e+00> : vector<16xf32>
    %46 = vector.multi_reduction <add>, %45, %cst_15 [1] : vector<16x32xf32> to vector<16xf32>
    %47 = vector.shape_cast %46 : vector<16xf32> to vector<16x1xf32>
    %48 = tpu.reciprocal %47 : vector<16x1xf32> -> vector<16x1xf32>
    %49 = vector.broadcast %48 : vector<16x1xf32> to vector<16x32xf32>
    %50 = arith.mulf %45, %49 : vector<16x32xf32>
    %cst_16 = arith.constant dense<0.000000e+00> : vector<16x64xf32>
    %51 = tpu.matmul %50, %11, %cst_16 {dimension_numbers = #tpu.dot_dimension_numbers<[1], [0], [0], [1], [0, 0, 1, 1], [], []>} : vector<16x32xf32>, vector<32x64xf32>, vector<16x64xf32> -> vector<16x64xf32>
    %52 = vector.extract_strided_slice %51 {offsets = [0, 0], sizes = [16, 32], strides = [1, 1]} : vector<16x64xf32> to vector<16x32xf32>
    %53 = vector.extract_strided_slice %51 {offsets = [0, 32], sizes = [16, 32], strides = [1, 1]} : vector<16x64xf32> to vector<16x32xf32>
    %c1_i32_17 = arith.constant 1 : i32
    %54 = tpu.dynamic_rotate %52 by %c1_i32_17 dim 0 : vector<16x32xf32>, i32 -> vector<16x32xf32>
    %c15_i32_18 = arith.constant 15 : i32
    %55 = tpu.dynamic_rotate %53 by %c15_i32_18 dim 0 : vector<16x32xf32>, i32 -> vector<16x32xf32>
    %cst_19 = arith.constant 0.000000e+00 : f32
    %56 = vector.broadcast %cst_19 : f32 to vector<16x32xf32>
    %57 = arith.select %15, %54, %56 : vector<16x32xi1>, vector<16x32xf32>
    %58 = arith.addf %9, %57 : vector<16x32xf32>
    %cst_20 = arith.constant 0.000000e+00 : f32
    %59 = vector.broadcast %cst_20 : f32 to vector<16x32xf32>
    %60 = arith.select %17, %55, %59 : vector<16x32xi1>, vector<16x32xf32>
    %61 = arith.addf %58, %60 : vector<16x32xf32>
    %62 = vector.broadcast %10 : vector<16x1xf32> to vector<16x32xf32>
    %63 = arith.mulf %61, %62 : vector<16x32xf32>
    %cst_21 = arith.constant dense<0xFF800000> : vector<16xf32>
    %64 = vector.multi_reduction <maximumf>, %63, %cst_21 [1] : vector<16x32xf32> to vector<16xf32>
    %65 = vector.shape_cast %64 : vector<16xf32> to vector<16x1xf32>
    %66 = vector.broadcast %65 : vector<16x1xf32> to vector<16x32xf32>
    %67 = arith.subf %63, %66 : vector<16x32xf32>
    %68 = math.exp %67 : vector<16x32xf32>
    %cst_22 = arith.constant dense<0.000000e+00> : vector<16xf32>
    %69 = vector.multi_reduction <add>, %68, %cst_22 [1] : vector<16x32xf32> to vector<16xf32>
    %70 = vector.shape_cast %69 : vector<16xf32> to vector<16x1xf32>
    %71 = tpu.reciprocal %70 : vector<16x1xf32> -> vector<16x1xf32>
    %72 = vector.broadcast %71 : vector<16x1xf32> to vector<16x32xf32>
    %73 = arith.mulf %68, %72 : vector<16x32xf32>
    %cst_23 = arith.constant dense<0.000000e+00> : vector<16x64xf32>
    %74 = tpu.matmul %73, %11, %cst_23 {dimension_numbers = #tpu.dot_dimension_numbers<[1], [0], [0], [1], [0, 0, 1, 1], [], []>} : vector<16x32xf32>, vector<32x64xf32>, vector<16x64xf32> -> vector<16x64xf32>
    %75 = vector.extract_strided_slice %74 {offsets = [0, 0], sizes = [16, 32], strides = [1, 1]} : vector<16x64xf32> to vector<16x32xf32>
    %76 = vector.extract_strided_slice %74 {offsets = [0, 32], sizes = [16, 32], strides = [1, 1]} : vector<16x64xf32> to vector<16x32xf32>
    %c1_i32_24 = arith.constant 1 : i32
    %77 = tpu.dynamic_rotate %75 by %c1_i32_24 dim 0 : vector<16x32xf32>, i32 -> vector<16x32xf32>
    %c15_i32_25 = arith.constant 15 : i32
    %78 = tpu.dynamic_rotate %76 by %c15_i32_25 dim 0 : vector<16x32xf32>, i32 -> vector<16x32xf32>
    %cst_26 = arith.constant 0.000000e+00 : f32
    %79 = vector.broadcast %cst_26 : f32 to vector<16x32xf32>
    %80 = arith.select %15, %77, %79 : vector<16x32xi1>, vector<16x32xf32>
    %81 = arith.addf %9, %80 : vector<16x32xf32>
    %cst_27 = arith.constant 0.000000e+00 : f32
    %82 = vector.broadcast %cst_27 : f32 to vector<16x32xf32>
    %83 = arith.select %17, %78, %82 : vector<16x32xi1>, vector<16x32xf32>
    %84 = arith.addf %81, %83 : vector<16x32xf32>
    %85 = vector.broadcast %10 : vector<16x1xf32> to vector<16x32xf32>
    %86 = arith.mulf %84, %85 : vector<16x32xf32>
    %87 = vector.shape_cast %86 : vector<16x32xf32> to vector<2x8x32xf32>
    %c0_28 = arith.constant 0 : index
    %c0_29 = arith.constant 0 : index
    %c0_30 = arith.constant 0 : index
    %88 = vector.load %arg5[%c0_28, %c0_29, %c0_30] : memref<2x8x32xf32, #tpu.memory_space<vmem>>, vector<2x8x32xf32>
    tpu.vector_store %arg5[%c0_28, %c0_29, %c0_30], %87 {strides = array<i32>} : memref<2x8x32xf32, #tpu.memory_space<vmem>>, vector<2x8x32xf32>,
    return
  }
  func.func @transform_0(%arg0: i32) -> (i32, i32, i32) {
    %c0_i32 = arith.constant 0 : i32
    %c0_i32_0 = arith.constant 0 : i32
    %c0_i32_1 = arith.constant 0 : i32
    return %arg0, %c0_i32, %c0_i32_0 : i32, i32, i32
  }
  func.func @transform_1(%arg0: i32) -> (i32, i32, i32) {
    %c0_i32 = arith.constant 0 : i32
    %c0_i32_0 = arith.constant 0 : i32
    %c0_i32_1 = arith.constant 0 : i32
    return %arg0, %c0_i32, %c0_i32_0 : i32, i32, i32
  }
  func.func @transform_2(%arg0: i32) -> (i32, i32) {
    %c0_i32 = arith.constant 0 : i32
    %c0_i32_0 = arith.constant 0 : i32
    %c0_i32_1 = arith.constant 0 : i32
    return %c0_i32, %c0_i32_0 : i32, i32
  }
  func.func @transform_3(%arg0: i32) -> (i32, i32) {
    %c0_i32 = arith.constant 0 : i32
    %c0_i32_0 = arith.constant 0 : i32
    %c0_i32_1 = arith.constant 0 : i32
    return %c0_i32, %c0_i32_0 : i32, i32
  }
  func.func @transform_4(%arg0: i32) -> (i32, i32, i32) {
    %c0_i32 = arith.constant 0 : i32
    %c0_i32_0 = arith.constant 0 : i32
    %c0_i32_1 = arith.constant 0 : i32
    return %arg0, %c0_i32, %c0_i32_0 : i32, i32, i32
  }
}

</mosaic_0001>

<llo_original>
// kernel: tpu_custom_call.1
$region0: #{tpu_custom_call.1}
  #allocation0 [shape = 'u32[]', space=smem, size = 0x4, offset = 0x4, fixed_abs, tag = 'smem constant byte address 0x4 - core index']
  #allocation1 [shape = 'u32[144,128]{1,0:T(1,128)}', space=vmem, size = 0x12000, scoped, tag = 'internal scratch']
  %s0 = inlined_call_operand.vmem [shape: f32[2,8,32], index: 0, kind: input, shape index: {}]
  %s1 = inlined_call_operand.vmem [shape: f32[2,8,1], index: 1, kind: input, shape index: {}]
  %s2 = inlined_call_operand.hbm [shape: f32[32,64], index: 2, kind: input, shape index: {}]
  %s3 = inlined_call_operand.vmem [shape: f32[8,32], index: 3, kind: input, shape index: {}]
  %s4 = inlined_call_operand.hbm [shape: f32[2,8,32], index: 4, kind: output, shape index: {}]
  %s5 = sld [smem:[#allocation0]]
  $region30: #{tpu_custom_call.1} parent=0
    _
  %s7 = ssub.s32 1, %s5
  %s8 = scalar_select 0, %s7, %s5
  $region1: #{tpu_custom_call.1} parent=0
    #allocation2 [shape = 'u8[16384]{0}', space=vmem, size = 0x4000, scoped, tag = 'input window, operand 2, single buffered']
    #allocation3 [shape = 's32[1]{0}', space=sflag, size = 0x4, scoped, tag = 'scoped memory for tpu_custom_call.1']
    #allocation4 [shape = 's32[1]{0}', space=sflag, size = 0x4, scoped, tag = 'scoped memory for tpu_custom_call.1']
    #allocation5 [shape = 'u8[8192]{0}', space=vmem, size = 0x2000, scoped, tag = 'output window, operand 0, single buffered']
    %9 = vsyncpa [#allocation3], 0
    %10 = vsyncpa [#allocation4], 0
    // Predicated region
    $region2: #{tpu_custom_call.1} parent=1 // pred_check
      _
    $region3: #{tpu_custom_call.1} parent=1 // pred_check_branch
      %12 = sbr.rel (0) target = $region5
    $region4: #{tpu_custom_call.1} parent=1 // pred_region
      _
    $region5: #{tpu_custom_call.1} parent=1 // pred_fallthru
      _
    // Predicated region
    $region6: #{tpu_custom_call.1} parent=1 // pred_check
      _
    $region7: #{tpu_custom_call.1} parent=1 // pred_check_branch
      %14 = sbr.rel (0) target = $region9
    $region8: #{tpu_custom_call.1} parent=1 // pred_region
      _
    $region9: #{tpu_custom_call.1} parent=1 // pred_fallthru
      _
    // Predicated region
    $region10: #{tpu_custom_call.1} parent=1 // pred_check
      _
    $region11: #{tpu_custom_call.1} parent=1 // pred_check_branch
      %16 = sbr.rel (0) target = $region13
    $region12: #{tpu_custom_call.1} parent=1 // pred_region
      %s18 = ssub.s32 512, 512
      %19 = vsyncadd [#allocation3], %s18
      %s20 = sshll.u32 [#allocation2], 4
      %s21 = int_to_ptr.vmem [resolvable:$true] %s20
      %26 = dma.hbm_to_vmem [thread:$0]  %s2, 512, %s21, [#allocation3], 128, 128, 8
    $region13: #{tpu_custom_call.1} parent=1 // pred_fallthru
      _
    // Predicated region
    $region14: #{tpu_custom_call.1} parent=1 // pred_check
      _
    $region15: #{tpu_custom_call.1} parent=1 // pred_check_branch
      %28 = sbr.rel (0) target = $region17
    $region16: #{tpu_custom_call.1} parent=1 // pred_region
      _
    $region17: #{tpu_custom_call.1} parent=1 // pred_fallthru
      _
    // Predicated region
    $region18: #{tpu_custom_call.1} parent=1 // pred_check
      _
    $region19: #{tpu_custom_call.1} parent=1 // pred_check_branch
      %30 = sbr.rel (0) target = $region21
    $region20: #{tpu_custom_call.1} parent=1 // pred_region
      %31 = dma.done [#allocation3], 512
    $region21: #{tpu_custom_call.1} parent=1 // pred_fallthru
      _
    %v32 = vld [vmem:[%s1] sm:$0xff]
    %v33 = vld [vmem:[%s1 + $0x8] sm:$0xff]
    %v34 = vld [vmem:[%s0] sm:$0xff]
    %v35 = vld [vmem:[%s0 + $0x8] sm:$0xff]
    %37 = vset.pattern.permute.xlu0 0
    %38 = vperm.xlu0 %37, %v32
    %v39 = vpop.permute.xlu0 %38
    %42 = vset.pattern.permute.xlu0 0
    %43 = vperm.xlu0 %42, %v33
    %v44 = vpop.permute.xlu0 %43
    %v46 = vmul.f32 %v34, %v39
    %v47 = vmul.f32 %v35, %v44
    %v48 = vld [vmem:[%s3] sm:$0xff]
    %v49 = vadd.f32 %v46, %v48
    %v50 = vadd.f32 %v47, %v48
    %v51 = vld [vmem:[#allocation2] sm:$0xff]
    %v52 = vld [vmem:[#allocation2 + $0x8] sm:$0xff]
    %v53 = vld [vmem:[#allocation2 + $0x10] sm:$0xff]
    %v54 = vld [vmem:[#allocation2 + $0x18] sm:$0xff]
    %v55 = vlaneseq
    %v56 = vshrl.u32 %v55, 7
    %vm57 = vcmp.ge.s32.totalorder %v56, 1
    %vm58 = vcmp.lt.s32.totalorder %v56, 7
    %vm59 = vcmask 261120
    %v60 = vsel %vm59, %v46, -inf
    %61 = vmax.xlane.f32.xlu0 %v60
    %v62 = vpop.xlane.xlu0 %61
    %v63 = vsel %vm59, %v47, -inf
    %64 = vmax.xlane.f32.xlu0 %v63
    %v65 = vpop.xlane.xlu0 %64
    %v66 = vsub.f32 %v46, %v62
    %v67 = vsub.f32 %v47, %v65
    %v68 = vmul.f32 %v66, 1.442695
    %v69 = vpow.pop %v68
    %v70 = vmul.f32 %v67, 1.442695
    %v71 = vpow.pop %v70
    %v72 = vsel %vm59, %v69, 0.0
    %73 = vadd.xlane.f32.xlu0 %v72
    %v74 = vpop.xlane.xlu0 %73
    %v75 = vsel %vm59, %v71, 0.0
    %76 = vadd.xlane.f32.xlu0 %v75
    %v77 = vpop.xlane.xlu0 %76
    %v78 = vrcp.pop %v74
    %v79 = vrcp.pop %v77
    %v80 = vmul.f32 %v69, %v78
    %v81 = vmul.f32 %v71, %v79
    %v83 = vsel %vm59, %v80, 0
    %v86 = vsel %vm59, %v81, 0
    %88 = vmatprep.subr.mxu0 0.0
    %89 = vmatpush1.msra.mxu0 %v51
    %90 = vmatprep.subr.mxu0 0.0
    %91 = vmatpush1.msra.mxu0 %v52
    %92 = vmatprep.subr.mxu0 0.0
    %93 = vmatpush1.msra.mxu0 %v53
    %94 = vmatprep.subr.mxu0 0.0
    %95 = vmatpush1.msra.mxu0 %v54
    %96 = vmatprep.subr.mxu0 0.0
    %97 = vmatpush1.msra.mxu0 0.0
    %98 = vmatprep.subr.mxu0 0.0
    %99 = vmatpush1.msra.mxu0 0.0
    %100 = vmatprep.subr.mxu0 0.0
    %101 = vmatpush1.msra.mxu0 0.0
    %102 = vmatprep.subr.mxu0 0.0
    %103 = vmatpush1.msra.mxu0 0.0
    %104 = vmatprep.subr.mxu0 0.0
    %105 = vmatpush1.msra.mxu0 0.0
    %106 = vmatprep.subr.mxu0 0.0
    %107 = vmatpush1.msra.mxu0 0.0
    %108 = vmatprep.subr.mxu0 0.0
    %109 = vmatpush1.msra.mxu0 0.0
    %110 = vmatprep.subr.mxu0 0.0
    %111 = vmatpush1.msra.mxu0 0.0
    %112 = vmatprep.subr.mxu0 0.0
    %113 = vmatpush1.msra.mxu0 0.0
    %114 = vmatprep.subr.mxu0 0.0
    %115 = vmatpush1.msra.mxu0 0.0
    %116 = vmatprep.subr.mxu0 0.0
    %117 = vmatpush1.msra.mxu0 0.0
    %118 = vmatprep.subr.mxu0 0.0
    %119 = vmatpush1.msra.mxu0 0.0
    %120 = vmatprep.subr.mxu0 0.0
    %121 = vmatpush1.msra.mxu0 0.0
    %122 = vmatprep.subr.mxu0 0.0
    %123 = vmatpush1.msra.mxu0 0.0
    %124 = vmatprep.subr.mxu0 0.0
    %125 = vmatpush1.msra.mxu0 0.0
    %126 = vmatprep.subr.mxu0 0.0
    %127 = vmatpush1.msra.mxu0 0.0
    %128 = vmatprep.subr.mxu0 0.0
    %129 = vmatpush1.msra.mxu0 0.0
    %130 = vmatprep.subr.mxu0 0.0
    %131 = vmatpush1.msra.mxu0 0.0
    %132 = vmatprep.subr.mxu0 0.0
    %133 = vmatpush1.msra.mxu0 0.0
    %134 = vmatprep.subr.mxu0 0.0
    %135 = vmatpush1.msra.mxu0 0.0
    %136 = vmatprep.subr.mxu0 0.0
    %137 = vmatpush1.msra.mxu0 0.0
    %138 = vmatprep.subr.mxu0 0.0
    %139 = vmatpush1.msra.mxu0 0.0
    %140 = vmatprep.subr.mxu0 0.0
    %141 = vmatpush1.msra.mxu0 0.0
    %142 = vmatprep.subr.mxu0 0.0
    %143 = vmatpush1.msra.mxu0 0.0
    %144 = vmatprep.subr.mxu0 0.0
    %145 = vmatpush1.msra.mxu0 0.0
    %146 = vmatprep.subr.mxu0 0.0
    %147 = vmatpush1.msra.mxu0 0.0
    %148 = vmatprep.subr.mxu0 0.0
    %149 = vmatpush1.msra.mxu0 0.0
    %150 = vmatprep.subr.mxu0 0.0
    %151 = vmatpush1.msra.mxu0 0.0
    %152 = vmatprep.mubr.f32.mxu0 0.0
    %153 = vmatmul.mubr.f32.gmra.mrb[0].mxu0 %v83
    %v154 = vpop.f32.mrb[0].mxu0
    %v155 = vadd.f32 0.0, %v154
    %v156 = vpop.f32.mrb[0].mxu0
    %157 = vmatprep.mubr.f32.mxu0 0.0
    %158 = vmatmul.mubr.f32.gmra.mrb[0].mxu0 %v86
    %v159 = vpop.f32.mrb[0].mxu0
    %v160 = vadd.f32 0.0, %v159
    %v161 = vpop.f32.mrb[0].mxu0
    %162 = vdwg.mxu0
    %v163 = vrot.slane %v155, 7
    %v164 = vrot.slane %v160, 7
    %vm165 = vcmp.lt.s32.totalorder %v56, 1
    %v166 = vsel %vm165, %v163, %v164
    %v167 = vsel %vm165, %v164, %v163
    %170 = vrot.lane.b32.xlu0 %v155, 96
    %v171 = vpop.permute.xlu0 %170
    %172 = vrot.lane.b32.xlu0 %v160, 96
    %v173 = vpop.permute.xlu0 %172
    %v176 = vrot.slane %v171, 1
    %v177 = vrot.slane %v173, 1
    %v178 = vsel %vm58, %v176, %v177
    %v179 = vsel %vm58, %v177, %v176
    %v180 = vsel %vm57, %v167, 0.0
    %v181 = vsel %vm57, %v166, 0.0
    %v182 = vadd.f32 %v49, %v180
    %v183 = vadd.f32 %v50, %v181
    %v184 = vsel %vm58, %v178, 0.0
    %v185 = vsel %vm58, %v179, 0.0
    %v186 = vadd.f32 %v182, %v184
    %v187 = vadd.f32 %v183, %v185
    %v188 = vmul.f32 %v186, %v39
    %v189 = vmul.f32 %v187, %v44
    %v190 = vsel %vm59, %v188, -inf
    %191 = vmax.xlane.f32.xlu0 %v190
    %v192 = vpop.xlane.xlu0 %191
    %v193 = vsel %vm59, %v189, -inf
    %194 = vmax.xlane.f32.xlu0 %v193
    %v195 = vpop.xlane.xlu0 %194
    %v196 = vsub.f32 %v188, %v192
    %v197 = vsub.f32 %v189, %v195
    %v198 = vmul.f32 %v196, 1.442695
    %v199 = vpow.pop %v198
    %v200 = vmul.f32 %v197, 1.442695
    %v201 = vpow.pop %v200
    %v202 = vsel %vm59, %v199, 0.0
    %203 = vadd.xlane.f32.xlu0 %v202
    %v204 = vpop.xlane.xlu0 %203
    %v205 = vsel %vm59, %v201, 0.0
    %206 = vadd.xlane.f32.xlu0 %v205
    %v207 = vpop.xlane.xlu0 %206
    %v208 = vrcp.pop %v204
    %v209 = vrcp.pop %v207
    %v210 = vmul.f32 %v199, %v208
    %v211 = vmul.f32 %v201, %v209
    %v213 = vsel %vm59, %v210, 0
    %v216 = vsel %vm59, %v211, 0
    %218 = vmatprep.subr.mxu0 0.0
    %219 = vmatpush1.msra.mxu0 %v51
    %220 = vmatprep.subr.mxu0 0.0
    %221 = vmatpush1.msra.mxu0 %v52
    %222 = vmatprep.subr.mxu0 0.0
    %223 = vmatpush1.msra.mxu0 %v53
    %224 = vmatprep.subr.mxu0 0.0
    %225 = vmatpush1.msra.mxu0 %v54
    %226 = vmatprep.subr.mxu0 0.0
    %227 = vmatpush1.msra.mxu0 0.0
    %228 = vmatprep.subr.mxu0 0.0
    %229 = vmatpush1.msra.mxu0 0.0
    %230 = vmatprep.subr.mxu0 0.0
    %231 = vmatpush1.msra.mxu0 0.0
    %232 = vmatprep.subr.mxu0 0.0
    %233 = vmatpush1.msra.mxu0 0.0
    %234 = vmatprep.subr.mxu0 0.0
    %235 = vmatpush1.msra.mxu0 0.0
    %236 = vmatprep.subr.mxu0 0.0
    %237 = vmatpush1.msra.mxu0 0.0
    %238 = vmatprep.subr.mxu0 0.0
    %239 = vmatpush1.msra.mxu0 0.0
    %240 = vmatprep.subr.mxu0 0.0
    %241 = vmatpush1.msra.mxu0 0.0
    %242 = vmatprep.subr.mxu0 0.0
    %243 = vmatpush1.msra.mxu0 0.0
    %244 = vmatprep.subr.mxu0 0.0
    %245 = vmatpush1.msra.mxu0 0.0
    %246 = vmatprep.subr.mxu0 0.0
    %247 = vmatpush1.msra.mxu0 0.0
    %248 = vmatprep.subr.mxu0 0.0
    %249 = vmatpush1.msra.mxu0 0.0
    %250 = vmatprep.subr.mxu0 0.0
    %251 = vmatpush1.msra.mxu0 0.0
    %252 = vmatprep.subr.mxu0 0.0
    %253 = vmatpush1.msra.mxu0 0.0
    %254 = vmatprep.subr.mxu0 0.0
    %255 = vmatpush1.msra.mxu0 0.0
    %256 = vmatprep.subr.mxu0 0.0
    %257 = vmatpush1.msra.mxu0 0.0
    %258 = vmatprep.subr.mxu0 0.0
    %259 = vmatpush1.msra.mxu0 0.0
    %260 = vmatprep.subr.mxu0 0.0
    %261 = vmatpush1.msra.mxu0 0.0
    %262 = vmatprep.subr.mxu0 0.0
    %263 = vmatpush1.msra.mxu0 0.0
    %264 = vmatprep.subr.mxu0 0.0
    %265 = vmatpush1.msra.mxu0 0.0
    %266 = vmatprep.subr.mxu0 0.0
    %267 = vmatpush1.msra.mxu0 0.0
    %268 = vmatprep.subr.mxu0 0.0
    %269 = vmatpush1.msra.mxu0 0.0
    %270 = vmatprep.subr.mxu0 0.0
    %271 = vmatpush1.msra.mxu0 0.0
    %272 = vmatprep.subr.mxu0 0.0
    %273 = vmatpush1.msra.mxu0 0.0
    %274 = vmatprep.subr.mxu0 0.0
    %275 = vmatpush1.msra.mxu0 0.0
    %276 = vmatprep.subr.mxu0 0.0
    %277 = vmatpush1.msra.mxu0 0.0
    %278 = vmatprep.subr.mxu0 0.0
    %279 = vmatpush1.msra.mxu0 0.0
    %280 = vmatprep.subr.mxu0 0.0
    %281 = vmatpush1.msra.mxu0 0.0
    %282 = vmatprep.mubr.f32.mxu0 0.0
    %283 = vmatmul.mubr.f32.gmra.mrb[0].mxu0 %v213
    %v284 = vpop.f32.mrb[0].mxu0
    %v285 = vadd.f32 0.0, %v284
    %v286 = vpop.f32.mrb[0].mxu0
    %287 = vmatprep.mubr.f32.mxu0 0.0
    %288 = vmatmul.mubr.f32.gmra.mrb[0].mxu0 %v216
    %v289 = vpop.f32.mrb[0].mxu0
    %v290 = vadd.f32 0.0, %v289
    %v291 = vpop.f32.mrb[0].mxu0
    %292 = vdwg.mxu0
    %v293 = vrot.slane %v285, 7
    %v294 = vrot.slane %v290, 7
    %v295 = vsel %vm165, %v293, %v294
    %v296 = vsel %vm165, %v294, %v293
    %299 = vrot.lane.b32.xlu0 %v285, 96
    %v300 = vpop.permute.xlu0 %299
    %301 = vrot.lane.b32.xlu0 %v290, 96
    %v302 = vpop.permute.xlu0 %301
    %v305 = vrot.slane %v300, 1
    %v306 = vrot.slane %v302, 1
    %v307 = vsel %vm58, %v305, %v306
    %v308 = vsel %vm58, %v306, %v305
    %v309 = vsel %vm57, %v296, 0.0
    %v310 = vsel %vm57, %v295, 0.0
    %v311 = vadd.f32 %v49, %v309
    %v312 = vadd.f32 %v50, %v310
    %v313 = vsel %vm58, %v307, 0.0
    %v314 = vsel %vm58, %v308, 0.0
    %v315 = vadd.f32 %v311, %v313
    %v316 = vadd.f32 %v312, %v314
    %v317 = vmul.f32 %v315, %v39
    %v318 = vmul.f32 %v316, %v44
    %v319 = vsel %vm59, %v317, -inf
    %320 = vmax.xlane.f32.xlu0 %v319
    %v321 = vpop.xlane.xlu0 %320
    %v322 = vsel %vm59, %v318, -inf
    %323 = vmax.xlane.f32.xlu0 %v322
    %v324 = vpop.xlane.xlu0 %323
    %v325 = vsub.f32 %v317, %v321
    %v326 = vsub.f32 %v318, %v324
    %v327 = vmul.f32 %v325, 1.442695
    %v328 = vpow.pop %v327
    %v329 = vmul.f32 %v326, 1.442695
    %v330 = vpow.pop %v329
    %v331 = vsel %vm59, %v328, 0.0
    %332 = vadd.xlane.f32.xlu0 %v331
    %v333 = vpop.xlane.xlu0 %332
    %v334 = vsel %vm59, %v330, 0.0
    %335 = vadd.xlane.f32.xlu0 %v334
    %v336 = vpop.xlane.xlu0 %335
    %v337 = vrcp.pop %v333
    %v338 = vrcp.pop %v336
    %v339 = vmul.f32 %v328, %v337
    %v340 = vmul.f32 %v330, %v338
    %v342 = vsel %vm59, %v339, 0
    %v345 = vsel %vm59, %v340, 0
    %347 = vmatprep.subr.mxu0 0.0
    %348 = vmatpush1.msra.mxu0 %v51
    %349 = vmatprep.subr.mxu0 0.0
    %350 = vmatpush1.msra.mxu0 %v52
    %351 = vmatprep.subr.mxu0 0.0
    %352 = vmatpush1.msra.mxu0 %v53
    %353 = vmatprep.subr.mxu0 0.0
    %354 = vmatpush1.msra.mxu0 %v54
    %355 = vmatprep.subr.mxu0 0.0
    %356 = vmatpush1.msra.mxu0 0.0
    %357 = vmatprep.subr.mxu0 0.0
    %358 = vmatpush1.msra.mxu0 0.0
    %359 = vmatprep.subr.mxu0 0.0
    %360 = vmatpush1.msra.mxu0 0.0
    %361 = vmatprep.subr.mxu0 0.0
    %362 = vmatpush1.msra.mxu0 0.0
    %363 = vmatprep.subr.mxu0 0.0
    %364 = vmatpush1.msra.mxu0 0.0
    %365 = vmatprep.subr.mxu0 0.0
    %366 = vmatpush1.msra.mxu0 0.0
    %367 = vmatprep.subr.mxu0 0.0
    %368 = vmatpush1.msra.mxu0 0.0
    %369 = vmatprep.subr.mxu0 0.0
    %370 = vmatpush1.msra.mxu0 0.0
    %371 = vmatprep.subr.mxu0 0.0
    %372 = vmatpush1.msra.mxu0 0.0
    %373 = vmatprep.subr.mxu0 0.0
    %374 = vmatpush1.msra.mxu0 0.0
    %375 = vmatprep.subr.mxu0 0.0
    %376 = vmatpush1.msra.mxu0 0.0
    %377 = vmatprep.subr.mxu0 0.0
    %378 = vmatpush1.msra.mxu0 0.0
    %379 = vmatprep.subr.mxu0 0.0
    %380 = vmatpush1.msra.mxu0 0.0
    %381 = vmatprep.subr.mxu0 0.0
    %382 = vmatpush1.msra.mxu0 0.0
    %383 = vmatprep.subr.mxu0 0.0
    %384 = vmatpush1.msra.mxu0 0.0
    %385 = vmatprep.subr.mxu0 0.0
    %386 = vmatpush1.msra.mxu0 0.0
    %387 = vmatprep.subr.mxu0 0.0
    %388 = vmatpush1.msra.mxu0 0.0
    %389 = vmatprep.subr.mxu0 0.0
    %390 = vmatpush1.msra.mxu0 0.0
    %391 = vmatprep.subr.mxu0 0.0
    %392 = vmatpush1.msra.mxu0 0.0
    %393 = vmatprep.subr.mxu0 0.0
    %394 = vmatpush1.msra.mxu0 0.0
    %395 = vmatprep.subr.mxu0 0.0
    %396 = vmatpush1.msra.mxu0 0.0
    %397 = vmatprep.subr.mxu0 0.0
    %398 = vmatpush1.msra.mxu0 0.0
    %399 = vmatprep.subr.mxu0 0.0
    %400 = vmatpush1.msra.mxu0 0.0
    %401 = vmatprep.subr.mxu0 0.0
    %402 = vmatpush1.msra.mxu0 0.0
    %403 = vmatprep.subr.mxu0 0.0
    %404 = vmatpush1.msra.mxu0 0.0
    %405 = vmatprep.subr.mxu0 0.0
    %406 = vmatpush1.msra.mxu0 0.0
    %407 = vmatprep.subr.mxu0 0.0
    %408 = vmatpush1.msra.mxu0 0.0
    %409 = vmatprep.subr.mxu0 0.0
    %410 = vmatpush1.msra.mxu0 0.0
    %411 = vmatprep.mubr.f32.mxu0 0.0
    %412 = vmatmul.mubr.f32.gmra.mrb[0].mxu0 %v342
    %v413 = vpop.f32.mrb[0].mxu0
    %v414 = vadd.f32 0.0, %v413
    %v415 = vpop.f32.mrb[0].mxu0
    %416 = vmatprep.mubr.f32.mxu0 0.0
    %417 = vmatmul.mubr.f32.gmra.mrb[0].mxu0 %v345
    %v418 = vpop.f32.mrb[0].mxu0
    %v419 = vadd.f32 0.0, %v418
    %v420 = vpop.f32.mrb[0].mxu0
    %421 = vdwg.mxu0
    %v422 = vrot.slane %v414, 7
    %v423 = vrot.slane %v419, 7
    %v424 = vsel %vm165, %v422, %v423
    %v425 = vsel %vm165, %v423, %v422
    %428 = vrot.lane.b32.xlu0 %v414, 96
    %v429 = vpop.permute.xlu0 %428
    %430 = vrot.lane.b32.xlu0 %v419, 96
    %v431 = vpop.permute.xlu0 %430
    %v434 = vrot.slane %v429, 1
    %v435 = vrot.slane %v431, 1
    %v436 = vsel %vm58, %v434, %v435
    %v437 = vsel %vm58, %v435, %v434
    %v438 = vsel %vm57, %v425, 0.0
    %v439 = vsel %vm57, %v424, 0.0
    %v440 = vadd.f32 %v49, %v438
    %v441 = vadd.f32 %v50, %v439
    %v442 = vsel %vm58, %v436, 0.0
    %v443 = vsel %vm58, %v437, 0.0
    %v444 = vadd.f32 %v440, %v442
    %v445 = vadd.f32 %v441, %v443
    %v446 = vmul.f32 %v444, %v39
    %v447 = vmul.f32 %v445, %v44
    %448 = vst.msk [vmem:[#allocation5] sm:$0xff] %vm59, %v446
    %449 = vst.msk [vmem:[#allocation5 + $0x8] sm:$0xff] %vm59, %v447
    // Predicated region
    $region22: #{tpu_custom_call.1} parent=1 // pred_check
      _
    $region23: #{tpu_custom_call.1} parent=1 // pred_check_branch
      %451 = sbr.rel (0) target = $region25
    $region24: #{tpu_custom_call.1} parent=1 // pred_region
      %s453 = ssub.s32 256, 256
      %454 = vsyncadd [#allocation4], %s453
      %s455 = sshll.u32 [#allocation5], 4
      %s456 = int_to_ptr.vmem [resolvable:$true] %s455
      %461 = dma.vmem_to_hbm [thread:$0]  %s456, 256, %s4, [#allocation4], 128, 128, 8
    $region25: #{tpu_custom_call.1} parent=1 // pred_fallthru
      _
    // Predicated region
    $region26: #{tpu_custom_call.1} parent=1 // pred_check
      _
    $region27: #{tpu_custom_call.1} parent=1 // pred_check_branch
      %463 = sbr.rel (0) target = $region29
    $region28: #{tpu_custom_call.1} parent=1 // pred_region
      %464 = dma.done [#allocation4], 256
    $region29: #{tpu_custom_call.1} parent=1 // pred_fallthru
      _
    %465 = vsyncpa [#allocation3], 1
    %466 = vsyncpa [#allocation4], 1

</llo_original>
